<compile_context>
chip_gen: v5e
topology: v5e:2x2
jax: 0.10.0
libtpu: 0.0.40
codegen_flags: <defaults>
</compile_context>

<pallas_src>
import functools

import jax
import jax.numpy as jnp
from jax.experimental import pallas as pl
from jax.experimental.pallas import tpu as pltpu


def _conv_stats_kernel(x_ref, w_ref, y_ref, ps_ref, *, k, stride, Ho):
    """Conv as k banded matmuls + per-block channel partial sums.

    x_ref : (TB, Hp, Wp*Cin)     bf16  padded input slices (W and Cin fused in lanes)
    w_ref : (k, Wp*Cin, Wo*Cout) bf16  banded (Toeplitz) weight, one band per kh
    y_ref : (TB, Ho, Wo*Cout)    f32   conv output (Wo and Cout fused in lanes)
    ps_ref: (1, 2, Wo*Cout)      f32   per-block partial [sum, sum-of-squares]
    """
    TB, Hp, WC = x_ref.shape
    NWo = y_ref.shape[-1]

    x = x_ref[...]                                        # (TB, Hp, WC) bf16
    acc = jnp.zeros((TB * Ho, NWo), jnp.float32)
    for kh in range(k):
        # input rows kh, kh+stride, ..., kh+(Ho-1)*stride  ->  (TB, Ho, WC)
        xs = jax.lax.slice(
            x, (0, kh, 0), (TB, kh + (Ho - 1) * stride + 1, WC), (1, stride, 1))
        acc = acc + jnp.dot(
            xs.reshape(TB * Ho, WC), w_ref[kh],
            preferred_element_type=jnp.float32)           # (TB*Ho, NWo) f32

    y_ref[...] = acc.reshape(TB, Ho, NWo)

    # Per-(wo, cout) partial sums for batch-norm stats; reduced over wo / blocks in the
    # (tiny) plain-JAX glue so the grid axis stays "parallel".
    s1 = jnp.sum(acc, axis=0, keepdims=True)              # (1, NWo)
    s2 = jnp.sum(acc * acc, axis=0, keepdims=True)        # (1, NWo)
    ps_ref[...] = jnp.concatenate([s1, s2], axis=0)[None]


def _bn_apply_kernel(y_ref, scale_ref, shift_ref, o_ref):
    # y_ref/o_ref: (TR, Wo*Cout) f32; scale/shift: (1, Wo*Cout) per-channel, tiled over Wo.
    o_ref[...] = y_ref[...] * scale_ref[...] + shift_ref[...]


def _banded_weight(conv_w, Wp, Wo, stride):
    """(Cout, Cin, 1, k, k) -> (k, Wp*Cin, Wo*Cout) Toeplitz weight.

    band[kh, w*Cin+ci, wo*Cout+co] = conv_w[co, ci, 0, kh, w - wo*stride]  (0 <= kw < k)
    so a single matmul over the fused (W, Cin) axis performs the kw and ci taps and lands
    directly in the fused lane-dense (Wo, Cout) output layout.
    """
    Cout, Cin, _, k, _ = conv_w.shape
    wt = jnp.transpose(conv_w[:, :, 0], (2, 3, 1, 0))                       # (kh, kw, Cin, Cout)
    kw_idx = jnp.arange(Wp)[None, :] - jnp.arange(Wo)[:, None] * stride     # (Wo, Wp)
    valid = (kw_idx >= 0) & (kw_idx < k)
    band = wt[:, jnp.clip(kw_idx, 0, k - 1)]                                # (k, Wo, Wp, Cin, Cout)
    band = band * valid[None, :, :, None, None].astype(wt.dtype)
    band = jnp.transpose(band, (0, 2, 3, 1, 4))                             # (k, Wp, Cin, Wo, Cout)
    return band.reshape(k, Wp * Cin, Wo * Cout)


def conv_layer_forward(x, conv_w, bn_gamma, bn_beta, *, stride=1, padding=0,
                       eps=1e-5, block_nb=4):
    """ConvLayer.forward equivalent on an NCDHW input.

    x:       (N, Cin, D, H, W) float32
    conv_w:  (Cout, Cin, 1, k, k)  (PyTorch Conv3d weight layout, bias=False)
    bn_gamma, bn_beta: (Cout,)
    """
    N, Cin, D, H, W = x.shape
    Cout = conv_w.shape[0]
    k = conv_w.shape[-1]
    Ho = (H + 2 * padding - k) // stride + 1
    Wo = (W + 2 * padding - k) // stride + 1
    NB = N * D
    Hp, Wp = H + 2 * padding, W + 2 * padding
    NWo = Wo * Cout

    TB = max(1, min(block_nb, NB))      # depth-slices per grid step (sets VMEM footprint)
    G = -(-NB // TB)                    # number of grid blocks
    NBp = G * TB                        # NB padded to a multiple of TB (zero slices)

    # ---- XLA glue: layout + zero padding + bf16 cast (spatial pad stays in XLA) ----
    x_nhwc = jnp.transpose(x, (0, 2, 3, 4, 1)).reshape(NB, H, W, Cin)
    x_pad = jnp.pad(
        x_nhwc, ((0, NBp - NB), (padding, padding), (padding, padding), (0, 0)))
    x_fused = x_pad.reshape(NBp, Hp, Wp * Cin).astype(jnp.bfloat16)
    w_band = _banded_weight(conv_w, Wp, Wo, stride).astype(jnp.bfloat16)

    conv_kern = functools.partial(_conv_stats_kernel, k=k, stride=stride, Ho=Ho)
    y, ps = pl.pallas_call(
        conv_kern,
        out_shape=(
            jax.ShapeDtypeStruct((NBp, Ho, NWo), jnp.float32),
            jax.ShapeDtypeStruct((G, 2, NWo), jnp.float32),
        ),
        grid=(G,),
        in_specs=[
            pl.BlockSpec((TB, Hp, Wp * Cin), lambda g: (g, 0, 0)),
            # constant index map: the small banded weight is fetched once and reused.
            pl.BlockSpec((k, Wp * Cin, NWo), lambda g: (0, 0, 0)),
        ],
        out_specs=(
            pl.BlockSpec((TB, Ho, NWo), lambda g: (g, 0, 0)),
            pl.BlockSpec((1, 2, NWo), lambda g: (g, 0, 0)),
        ),
        compiler_params=pltpu.CompilerParams(dimension_semantics=("parallel",)),
    )(x_fused, w_band)

    # ---- XLA glue: tiny stats math (block partials -> mean/var -> scale/shift rows) ----
    sums = jnp.sum(ps.reshape(G, 2, Wo, Cout), axis=(0, 2))      # (2, Cout)
    count = NB * Ho * Wo
    mean = sums[0] / count
    var = jnp.maximum(sums[1] / count - mean * mean, 0.0)        # biased var, clamped >= 0
    inv = jax.lax.rsqrt(var + eps)
    scale_c = bn_gamma * inv
    shift_c = bn_beta - mean * scale_c
    scale_row = jnp.tile(scale_c, Wo).reshape(1, NWo).astype(jnp.float32)
    shift_row = jnp.tile(shift_c, Wo).reshape(1, NWo).astype(jnp.float32)
    # TODO(synk): BatchNorm running_mean/running_var update (module state mutation) is not
    # materialized; this is the pure training-mode forward.

    rows, TR = NBp * Ho, TB * Ho
    out_flat = pl.pallas_call(
        _bn_apply_kernel,
        out_shape=jax.ShapeDtypeStruct((rows, NWo), jnp.float32),
        grid=(G,),
        in_specs=[
            pl.BlockSpec((TR, NWo), lambda g: (g, 0)),
            pl.BlockSpec((1, NWo), lambda g: (0, 0)),
            pl.BlockSpec((1, NWo), lambda g: (0, 0)),
        ],
        out_specs=pl.BlockSpec((TR, NWo), lambda g: (g, 0)),
        input_output_aliases={0: 0},     # normalize the conv output slab in place
        compiler_params=pltpu.CompilerParams(dimension_semantics=("parallel",)),
    )(y.reshape(rows, NWo), scale_row, shift_row)

    # ---- back to PyTorch NCDHW (HBM-level reshapes are free; one transpose) ----
    out = out_flat.reshape(NBp, Ho, Wo, Cout)[:NB].reshape(N, D, Ho, Wo, Cout)
    return jnp.transpose(out, (0, 4, 1, 2, 3))


if __name__ == "__main__":
    key = jax.random.PRNGKey(0)
    k1, k2, k3, k4 = jax.random.split(key, 4)

    # ConvLayer(in_channels=4, out_channels=8, kernel_size=3, stride=1, padding=1)
    N, Cin, D, H, W = 2, 4, 3, 16, 16
    Cout, ksz, stride, padding = 8, 3, 1, 1

    x = jax.random.normal(k1, (N, Cin, D, H, W), jnp.float32)
    conv_w = 0.1 * jax.random.normal(k2, (Cout, Cin, 1, ksz, ksz), jnp.float32)
    bn_gamma = 1.0 + 0.1 * jax.random.normal(k3, (Cout,), jnp.float32)
    bn_beta = 0.1 * jax.random.normal(k4, (Cout,), jnp.float32)

    fwd = jax.jit(functools.partial(conv_layer_forward, stride=stride, padding=padding))
    out = jax.block_until_ready(fwd(x, conv_w, bn_gamma, bn_beta))
    assert out.shape == (N, Cout, D, H, W), out.shape

    # pure-JAX reference (same training-mode batch-norm semantics)
    def reference(xr, wr):
        x2 = jnp.transpose(xr, (0, 2, 1, 3, 4)).reshape(N * D, Cin, H, W)
        yref = jax.lax.conv_general_dilated(
            x2, wr[:, :, 0], (stride, stride),
            ((padding, padding), (padding, padding)),
            dimension_numbers=("NCHW", "OIHW", "NCHW"),
            precision=jax.lax.Precision.HIGHEST,
        )
        m = jnp.mean(yref, axis=(0, 2, 3))
        v = jnp.var(yref, axis=(0, 2, 3))
        r = (yref - m[None, :, None, None]) * jax.lax.rsqrt(v + 1e-5)[None, :, None, None]
        r = r * bn_gamma[None, :, None, None] + bn_beta[None, :, None, None]
        return jnp.transpose(r.reshape(N, D, Cout, H, W), (0, 2, 1, 3, 4))

    # Tight check: reference built from the same bf16-rounded inputs the kernel consumes
    # (kernel accumulates in f32, so this isolates kernel correctness).
    ref_bf16 = reference(x.astype(jnp.bfloat16).astype(jnp.float32),
                         conv_w.astype(jnp.bfloat16).astype(jnp.float32))
    err = float(jnp.max(jnp.abs(out - ref_bf16)))
    assert err < 3e-3, f"max abs err vs bf16-input reference {err}"

    # Module-semantics check: full-f32 reference; slack covers the intentional bf16 cast
    # of activations/weights (perf-review item).
    ref_f32 = reference(x, conv_w)
    err32 = float(jnp.max(jnp.abs(out - ref_f32)))
    assert err32 < 5e-2, f"max abs err vs f32 reference {err32}"

    print("KERNEL_OK")
</pallas_src>

<mosaic_0001>
module attributes {stable_mosaic.version = 11 : i64} {
  func.func @_conv_stats_kernel(%arg0: i32, %arg1: memref<4x18x72xbf16, #tpu.memory_space<vmem>>, %arg2: memref<3x72x128xbf16, #tpu.memory_space<vmem>>, %arg3: memref<4x16x128xf32, #tpu.memory_space<vmem>>, %arg4: memref<1x2x128xf32, #tpu.memory_space<vmem>>) attributes {dimension_semantics = [#tpu.dimension_semantics<parallel>], iteration_bounds = array<i64: 2>, scalar_prefetch = 0 : i64, scratch_operands = 0 : i64, tpu.core_type = #tpu.core_type<tc>, window_params = [{transform_indices = @transform_0, window_bounds = array<i64: 4, 18, 72>}, {pipeline_mode = #tpu.pipeline_mode<synchronous>, transform_indices = @transform_1, window_bounds = array<i64: 3, 72, 128>}, {transform_indices = @transform_2, window_bounds = array<i64: 4, 16, 128>}, {transform_indices = @transform_3, window_bounds = array<i64: 1, 2, 128>}]} {
    %c0 = arith.constant 0 : index
    %c0_0 = arith.constant 0 : index
    %c0_1 = arith.constant 0 : index
    %0 = vector.load %arg1[%c0, %c0_0, %c0_1] : memref<4x18x72xbf16, #tpu.memory_space<vmem>>, vector<4x18x72xbf16>
    %cst = arith.constant 0.000000e+00 : f32
    %1 = vector.broadcast %cst : f32 to vector<64x128xf32>
    %2 = vector.extract_strided_slice %0 {offsets = [0, 0, 0], sizes = [4, 16, 72], strides = [1, 1, 1]} : vector<4x18x72xbf16> to vector<4x16x72xbf16>
    %3 = vector.shape_cast %2 : vector<4x16x72xbf16> to vector<64x72xbf16>
    %c0_2 = arith.constant 0 : index
    %c0_3 = arith.constant 0 : index
    %c0_4 = arith.constant 0 : index
    %4 = vector.load %arg2[%c0_2, %c0_3, %c0_4] : memref<3x72x128xbf16, #tpu.memory_space<vmem>>, vector<1x72x128xbf16>
    %5 = vector.shape_cast %4 : vector<1x72x128xbf16> to vector<72x128xbf16>
    %cst_5 = arith.constant dense<0.000000e+00> : vector<64x128xf32>
    %6 = tpu.matmul %3, %5, %cst_5 {dimension_numbers = #tpu.dot_dimension_numbers<[1], [0], [0], [1], [0, 0, 1, 1], [], []>} : vector<64x72xbf16>, vector<72x128xbf16>, vector<64x128xf32> -> vector<64x128xf32>
    %7 = arith.addf %1, %6 : vector<64x128xf32>
    %8 = vector.extract_strided_slice %0 {offsets = [0, 1, 0], sizes = [4, 16, 72], strides = [1, 1, 1]} : vector<4x18x72xbf16> to vector<4x16x72xbf16>
    %9 = vector.shape_cast %8 : vector<4x16x72xbf16> to vector<64x72xbf16>
    %c1 = arith.constant 1 : index
    %c0_6 = arith.constant 0 : index
    %c0_7 = arith.constant 0 : index
    %10 = vector.load %arg2[%c1, %c0_6, %c0_7] : memref<3x72x128xbf16, #tpu.memory_space<vmem>>, vector<1x72x128xbf16>
    %11 = vector.shape_cast %10 : vector<1x72x128xbf16> to vector<72x128xbf16>
    %cst_8 = arith.constant dense<0.000000e+00> : vector<64x128xf32>
    %12 = tpu.matmul %9, %11, %cst_8 {dimension_numbers = #tpu.dot_dimension_numbers<[1], [0], [0], [1], [0, 0, 1, 1], [], []>} : vector<64x72xbf16>, vector<72x128xbf16>, vector<64x128xf32> -> vector<64x128xf32>
    %13 = arith.addf %7, %12 : vector<64x128xf32>
    %14 = vector.extract_strided_slice %0 {offsets = [0, 2, 0], sizes = [4, 16, 72], strides = [1, 1, 1]} : vector<4x18x72xbf16> to vector<4x16x72xbf16>
    %15 = vector.shape_cast %14 : vector<4x16x72xbf16> to vector<64x72xbf16>
    %c2 = arith.constant 2 : index
    %c0_9 = arith.constant 0 : index
    %c0_10 = arith.constant 0 : index
    %16 = vector.load %arg2[%c2, %c0_9, %c0_10] : memref<3x72x128xbf16, #tpu.memory_space<vmem>>, vector<1x72x128xbf16>
    %17 = vector.shape_cast %16 : vector<1x72x128xbf16> to vector<72x128xbf16>
    %cst_11 = arith.constant dense<0.000000e+00> : vector<64x128xf32>
    %18 = tpu.matmul %15, %17, %cst_11 {dimension_numbers = #tpu.dot_dimension_numbers<[1], [0], [0], [1], [0, 0, 1, 1], [], []>} : vector<64x72xbf16>, vector<72x128xbf16>, vector<64x128xf32> -> vector<64x128xf32>
    %19 = arith.addf %13, %18 : vector<64x128xf32>
    %20 = vector.shape_cast %19 : vector<64x128xf32> to vector<4x16x128xf32>
    %c0_12 = arith.constant 0 : index
    %c0_13 = arith.constant 0 : index
    %c0_14 = arith.constant 0 : index
    %21 = vector.load %arg3[%c0_12, %c0_13, %c0_14] : memref<4x16x128xf32, #tpu.memory_space<vmem>>, vector<4x16x128xf32>
    tpu.vector_store %arg3[%c0_12, %c0_13, %c0_14], %20 {strides = array<i32>} : memref<4x16x128xf32, #tpu.memory_space<vmem>>, vector<4x16x128xf32>,
    %cst_15 = arith.constant dense<0.000000e+00> : vector<128xf32>
    %22 = vector.multi_reduction <add>, %19, %cst_15 [0] : vector<64x128xf32> to vector<128xf32>
    %23 = vector.shape_cast %22 : vector<128xf32> to vector<1x128xf32>
    %24 = arith.mulf %19, %19 : vector<64x128xf32>
    %cst_16 = arith.constant dense<0.000000e+00> : vector<128xf32>
    %25 = vector.multi_reduction <add>, %24, %cst_16 [0] : vector<64x128xf32> to vector<128xf32>
    %26 = vector.shape_cast %25 : vector<128xf32> to vector<1x128xf32>
    %27 = tpu.concatenate %23, %26 in 0 : vector<1x128xf32>, vector<1x128xf32> -> vector<2x128xf32>
    %28 = vector.shape_cast %27 : vector<2x128xf32> to vector<1x2x128xf32>
    %c0_17 = arith.constant 0 : index
    %c0_18 = arith.constant 0 : index
    %c0_19 = arith.constant 0 : index
    %29 = vector.load %arg4[%c0_17, %c0_18, %c0_19] : memref<1x2x128xf32, #tpu.memory_space<vmem>>, vector<1x2x128xf32>
    tpu.vector_store %arg4[%c0_17, %c0_18, %c0_19], %28 {strides = array<i32>} : memref<1x2x128xf32, #tpu.memory_space<vmem>>, vector<1x2x128xf32>,
    return
  }
  func.func @transform_0(%arg0: i32) -> (i32, i32, i32) {
    %c0_i32 = arith.constant 0 : i32
    %c0_i32_0 = arith.constant 0 : i32
    %c0_i32_1 = arith.constant 0 : i32
    return %arg0, %c0_i32, %c0_i32_0 : i32, i32, i32
  }
  func.func @transform_1(%arg0: i32) -> (i32, i32, i32) {
    %c0_i32 = arith.constant 0 : i32
    %c0_i32_0 = arith.constant 0 : i32
    %c0_i32_1 = arith.constant 0 : i32
    %c0_i32_2 = arith.constant 0 : i32
    return %c0_i32, %c0_i32_0, %c0_i32_1 : i32, i32, i32
  }
  func.func @transform_2(%arg0: i32) -> (i32, i32, i32) {
    %c0_i32 = arith.constant 0 : i32
    %c0_i32_0 = arith.constant 0 : i32
    %c0_i32_1 = arith.constant 0 : i32
    return %arg0, %c0_i32, %c0_i32_0 : i32, i32, i32
  }
  func.func @transform_3(%arg0: i32) -> (i32, i32, i32) {
    %c0_i32 = arith.constant 0 : i32
    %c0_i32_0 = arith.constant 0 : i32
    %c0_i32_1 = arith.constant 0 : i32
    return %arg0, %c0_i32, %c0_i32_0 : i32, i32, i32
  }
}

module attributes {stable_mosaic.version = 11 : i64} {
  func.func @_bn_apply_kernel(%arg0: i32, %arg1: memref<64x128xf32, #tpu.memory_space<vmem>>, %arg2: memref<1x128xf32, #tpu.memory_space<vmem>>, %arg3: memref<1x128xf32, #tpu.memory_space<vmem>>, %arg4: memref<64x128xf32, #tpu.memory_space<vmem>>) attributes {dimension_semantics = [#tpu.dimension_semantics<parallel>], iteration_bounds = array<i64: 2>, scalar_prefetch = 0 : i64, scratch_operands = 0 : i64, tpu.core_type = #tpu.core_type<tc>, window_params = [{transform_indices = @transform_0, window_bounds = array<i64: 64, 128>}, {pipeline_mode = #tpu.pipeline_mode<synchronous>, transform_indices = @transform_1, window_bounds = array<i64: 1, 128>}, {pipeline_mode = #tpu.pipeline_mode<synchronous>, transform_indices = @transform_2, window_bounds = array<i64: 1, 128>}, {transform_indices = @transform_3, window_bounds = array<i64: 64, 128>}]} {
    %c0 = arith.constant 0 : index
    %c0_0 = arith.constant 0 : index
    %0 = vector.load %arg1[%c0, %c0_0] : memref<64x128xf32, #tpu.memory_space<vmem>>, vector<64x128xf32>
    %c0_1 = arith.constant 0 : index
    %c0_2 = arith.constant 0 : index
    %1 = vector.load %arg2[%c0_1, %c0_2] : memref<1x128xf32, #tpu.memory_space<vmem>>, vector<1x128xf32>
    %2 = vector.broadcast %1 : vector<1x128xf32> to vector<64x128xf32>
    %3 = arith.mulf %0, %2 : vector<64x128xf32>
    %c0_3 = arith.constant 0 : index
    %c0_4 = arith.constant 0 : index
    %4 = vector.load %arg3[%c0_3, %c0_4] : memref<1x128xf32, #tpu.memory_space<vmem>>, vector<1x128xf32>
    %5 = vector.broadcast %4 : vector<1x128xf32> to vector<64x128xf32>
    %6 = arith.addf %3, %5 : vector<64x128xf32>
    %c0_5 = arith.constant 0 : index
    %c0_6 = arith.constant 0 : index
    %7 = vector.load %arg4[%c0_5, %c0_6] : memref<64x128xf32, #tpu.memory_space<vmem>>, vector<64x128xf32>
    tpu.vector_store %arg4[%c0_5, %c0_6], %6 {strides = array<i32>} : memref<64x128xf32, #tpu.memory_space<vmem>>, vector<64x128xf32>,
    return
  }
  func.func @transform_0(%arg0: i32) -> (i32, i32) {
    %c0_i32 = arith.constant 0 : i32
    %c0_i32_0 = arith.constant 0 : i32
    return %arg0, %c0_i32 : i32, i32
  }
  func.func @transform_1(%arg0: i32) -> (i32, i32) {
    %c0_i32 = arith.constant 0 : i32
    %c0_i32_0 = arith.constant 0 : i32
    %c0_i32_1 = arith.constant 0 : i32
    return %c0_i32, %c0_i32_0 : i32, i32
  }
  func.func @transform_2(%arg0: i32) -> (i32, i32) {
    %c0_i32 = arith.constant 0 : i32
    %c0_i32_0 = arith.constant 0 : i32
    %c0_i32_1 = arith.constant 0 : i32
    return %c0_i32, %c0_i32_0 : i32, i32
  }
  func.func @transform_3(%arg0: i32) -> (i32, i32) {
    %c0_i32 = arith.constant 0 : i32
    %c0_i32_0 = arith.constant 0 : i32
    return %arg0, %c0_i32 : i32, i32
  }
}

</mosaic_0001>

<llo_original>
// kernel: conv_layer_forward.2
$region0: #{conv_layer_forward.2}
  #allocation0 [shape = 'u32[]', space=smem, size = 0x4, offset = 0x4, fixed_abs, tag = 'smem constant byte address 0x4 - core index']
  #allocation1 [shape = 'u32[72,128]{1,0:T(1,128)}', space=vmem, size = 0x9000, scoped, tag = 'internal scratch']
  %s0 = inlined_call_operand.vmem [shape: bf16[8,18,72], index: 0, kind: input, shape index: {}]
  %s1 = inlined_call_operand.vmem [shape: bf16[3,72,128], index: 1, kind: input, shape index: {}]
  %s2 = inlined_call_operand.vmem [shape: f32[8,16,128], index: 2, kind: output, shape index: {0}]
  %s3 = inlined_call_operand.vmem [shape: f32[2,2,128], index: 3, kind: output, shape index: {1}]
  %4 = xla_tuple %s2, %s3
  %s5 = sld [smem:[#allocation0]]
  $region49: #{conv_layer_forward.2} parent=0
    _
  %s7 = ssub.s32 1, %s5
  %s8 = scalar_select 0, %s7, %s5
  loop: start=0, step=1, limit=4
  $region2: #{conv_layer_forward.2} parent=0 // loop_pre_header
    _
  $region3: #{conv_layer_forward.2} parent=0 // loop_header
    %s10 = sphi 0, %s14
    %p11 = scmp.ge.s32.totalorder %s10, 4
    %s20 = sphi 0, %s22
    %s23 = sphi 0, %s20
    %s24 = sphi 0, %s23
    %s40 = sphi 0, %s24
    %s44 = sphi 0, %s44
    %s46 = sphi 0, %s44
    %s47 = sphi 0, %s46
    %s61 = sphi 0, %s47
    %s67 = sphi 0, %s69
    %s70 = sphi 0, %s67
    %s71 = sphi 0, %s70
    %s87 = sphi 0, %s71
    %s93 = sphi 0, %s95
    %s96 = sphi 0, %s93
    %s97 = sphi 0, %s96
    %s113 = sphi 0, %s97
  $region4: #{conv_layer_forward.2} parent=0 // loop_header_branch
    %13 = sbr.rel (%p11) target = $region8
  $region5: #{conv_layer_forward.2} parent=0 // loop_body
    %s15 = ssub.s32 %s10, 1
    %s16 = ssub.s32 %s10, 2
    %s17 = sadd.s32 %s10, 1
    %s18 = ssub.s32 %s10, %s17
    %p19 = scmp.eq.s32.totalorder %s18, 0
    %s21 = sadd.s32 %s20, 1
    %s22 = scalar_select %p19, %s20, %s21
    %p25 = pneg %p19
    %p26 = scmp.eq.s32.totalorder %s10, 1
    %p27 = por %p25, %p26
    %p28 = scmp.ne.s32.totalorder %s20, %s23
    %p29 = scmp.eq.s32.totalorder %s10, 0
    %p30 = por %p28, %p29
    %p31 = scmp.ne.s32.totalorder %s20, %s23
    %p32 = scmp.eq.s32.totalorder %s15, 1
    %p33 = por %p31, %p32
    %p34 = scmp.ne.s32.totalorder %s23, %s24
    %p35 = scmp.eq.s32.totalorder %s15, 0
    %p36 = por %p34, %p35
    %p37 = scmp.ne.s32.totalorder %s23, %s24
    %p38 = scmp.eq.s32.totalorder %s16, 1
    %p39 = por %p37, %p38
    %p41 = scmp.ne.s32.totalorder %s24, %s40
    %p42 = scmp.eq.s32.totalorder %s16, 0
    %p43 = por %p41, %p42
    %s45 = sadd.s32 %s44, 1
    %p48 = scmp.eq.s32.totalorder %s10, 1
    %p49 = scmp.ne.s32.totalorder %s44, %s46
    %p50 = scmp.eq.s32.totalorder %s10, 0
    %p51 = por %p49, %p50
    %p52 = scmp.ne.s32.totalorder %s44, %s46
    %p53 = scmp.eq.s32.totalorder %s15, 1
    %p54 = por %p52, %p53
    %p55 = scmp.ne.s32.totalorder %s46, %s47
    %p56 = scmp.eq.s32.totalorder %s15, 0
    %p57 = por %p55, %p56
    %p58 = scmp.ne.s32.totalorder %s46, %s47
    %p59 = scmp.eq.s32.totalorder %s16, 1
    %p60 = por %p58, %p59
    %p62 = scmp.ne.s32.totalorder %s47, %s61
    %p63 = scmp.eq.s32.totalorder %s16, 0
    %p64 = por %p62, %p63
    %s65 = ssub.s32 %s10, %s17
    %p66 = scmp.eq.s32.totalorder %s65, 0
    %s68 = sadd.s32 %s67, 1
    %s69 = scalar_select %p66, %s67, %s68
    %p72 = pneg %p66
    %p73 = scmp.eq.s32.totalorder %s10, 1
    %p74 = por %p72, %p73
    %p75 = scmp.ne.s32.totalorder %s67, %s70
    %p76 = scmp.eq.s32.totalorder %s10, 0
    %p77 = por %p75, %p76
    %p78 = scmp.ne.s32.totalorder %s67, %s70
    %p79 = scmp.eq.s32.totalorder %s15, 1
    %p80 = por %p78, %p79
    %p81 = scmp.ne.s32.totalorder %s70, %s71
    %p82 = scmp.eq.s32.totalorder %s15, 0
    %p83 = por %p81, %p82
    %p84 = scmp.ne.s32.totalorder %s70, %s71
    %p85 = scmp.eq.s32.totalorder %s16, 1
    %p86 = por %p84, %p85
    %p88 = scmp.ne.s32.totalorder %s71, %s87
    %p89 = scmp.eq.s32.totalorder %s16, 0
    %p90 = por %p88, %p89
    %s91 = ssub.s32 %s10, %s17
    %p92 = scmp.eq.s32.totalorder %s91, 0
    %s94 = sadd.s32 %s93, 1
    %s95 = scalar_select %p92, %s93, %s94
    %p98 = pneg %p92
    %p99 = scmp.eq.s32.totalorder %s10, 1
    %p100 = por %p98, %p99
    %p101 = scmp.ne.s32.totalorder %s93, %s96
    %p102 = scmp.eq.s32.totalorder %s10, 0
    %p103 = por %p101, %p102
    %p104 = scmp.ne.s32.totalorder %s93, %s96
    %p105 = scmp.eq.s32.totalorder %s15, 1
    %p106 = por %p104, %p105
    %p107 = scmp.ne.s32.totalorder %s96, %s97
    %p108 = scmp.eq.s32.totalorder %s15, 0
    %p109 = por %p107, %p108
    %p110 = scmp.ne.s32.totalorder %s96, %s97
    %p111 = scmp.eq.s32.totalorder %s16, 1
    %p112 = por %p110, %p111
    %p114 = scmp.ne.s32.totalorder %s97, %s113
    %p115 = scmp.eq.s32.totalorder %s16, 0
    %p116 = por %p114, %p115
    %p117 = scmp.le.s32.totalorder 1, %s10
    %p118 = scmp.lt.s32.totalorder %s10, 3
    %p119 = pnand %p117, %p118
    %p120 = pneg %p119
    // Predicated region
    $region9: #{conv_layer_forward.2} parent=5 // pred_check
      _
    $region10: #{conv_layer_forward.2} parent=5 // pred_check_branch
      %122 = sbr.rel (%p119) target = $region12
    $region11: #{conv_layer_forward.2} parent=5 // pred_region
      %s123 = ssub.s32 %s10, 1
      // Predicated region
      $region13: #{conv_layer_forward.2} parent=11 // pred_check
        %p124 = pneg %p57
      $region14: #{conv_layer_forward.2} parent=11 // pred_check_branch
        %126 = sbr.rel (%p124) target = $region16
      $region15: #{conv_layer_forward.2} parent=11 // pred_region
        _
      $region16: #{conv_layer_forward.2} parent=11 // pred_fallthru
        _
    $region12: #{conv_layer_forward.2} parent=5 // pred_fallthru
      _
    %p127 = scmp.lt.s32.totalorder %s10, 2
    // Predicated region
    $region17: #{conv_layer_forward.2} parent=5 // pred_check
      %p128 = pneg %p127
    $region18: #{conv_layer_forward.2} parent=5 // pred_check_branch
      %130 = sbr.rel (%p128) target = $region20
    $region19: #{conv_layer_forward.2} parent=5 // pred_region
      // Predicated region
      $region21: #{conv_layer_forward.2} parent=19 // pred_check
        %p131 = pneg %p30
      $region22: #{conv_layer_forward.2} parent=19 // pred_check_branch
        %133 = sbr.rel (%p131) target = $region24
      $region23: #{conv_layer_forward.2} parent=19 // pred_region
        %s134 = smul.u32 4, %s10
        %p135 = scmp.lt.s32.totalorder %s134, 7
        %s136 = scalar_select %p135, %s134, 7
        %s137 = smul.addr %s136, 3
        %s138 = smul.addr %s137, 4
        %s139 = scalar_lea.vmem %s0, %s138
        %s140 = smul.u32 4, %s10
      $region24: #{conv_layer_forward.2} parent=19 // pred_fallthru
        _
    $region20: #{conv_layer_forward.2} parent=5 // pred_fallthru
      _
    %p141 = scmp.le.s32.totalorder 1, %s10
    %p142 = scmp.lt.s32.totalorder %s10, 3
    %p143 = pnand %p141, %p142
    %p144 = pneg %p143
    // Predicated region
    $region25: #{conv_layer_forward.2} parent=5 // pred_check
      _
    $region26: #{conv_layer_forward.2} parent=5 // pred_check_branch
      %146 = sbr.rel (%p143) target = $region28
    $region27: #{conv_layer_forward.2} parent=5 // pred_region
      %s147 = ssub.s32 %s10, 1
      %s148 = smul.u32 4, %s15
      %p149 = scmp.lt.s32.totalorder %s148, 7
      %s150 = scalar_select %p149, %s148, 7
      %s151 = smul.addr %s150, 3
      %s152 = smul.addr %s151, 4
      %s153 = scalar_lea.vmem %s0, %s152
      %p154 = pneg %p36
      %p155 = pneg %p33
      %p156 = pneg %p57
      %p157 = pneg %p54
      %p158 = pneg %p83
      %p159 = pneg %p80
      %s160 = smul.u32 4, %s15
      %p161 = scmp.lt.s32.totalorder %s160, 7
      %s162 = scalar_select %p161, %s160, 7
      %s163 = smul.addr %s162, 2
      %s164 = smul.addr %s163, 8
      %s165 = scalar_lea.vmem %s2, %s164
      %p166 = pneg %p109
      %p167 = pneg %p106
      %p168 = scmp.lt.s32.totalorder %s15, 1
      %s169 = scalar_select %p168, %s15, 1
      %s170 = smul.addr %s169, 2
      %s171 = scalar_lea.vmem %s3, %s170
      %s172 = smul.u32 4, %s15
      %p173 = scmp.lt.s32.totalorder %s172, 7
      %s174 = scalar_select %p173, %s172, 7
      %s175 = smul.addr %s174, 3
      %s176 = smul.addr %s175, 4
      %s177 = scalar_lea.vmem %s0, %s176
      %s178 = smul.u32 4, %s15
      %s179 = smul.u32 4, %s15
      %p180 = scmp.lt.s32.totalorder %s179, 7
      %s181 = scalar_select %p180, %s179, 7
      %s182 = smul.addr %s181, 2
      %s183 = smul.addr %s182, 8
      %s184 = scalar_lea.vmem %s2, %s183
      %s185 = smul.u32 4, %s15
      %p186 = scmp.lt.s32.totalorder %s15, 1
      %s187 = scalar_select %p186, %s15, 1
      %s188 = smul.addr %s187, 2
      %s189 = scalar_lea.vmem %s3, %s188
      %v191 = vld [vmem:[%s177] sm:$0xf]
      %v192 = vld [vmem:[%s177 + $0x4] sm:$0xf]
      %v193 = vld [vmem:[%s177 + $0x8] sm:$0x1]
      %v194 = vld [vmem:[%s177 + $0xc] sm:$0xf]
      %v195 = vld [vmem:[%s177 + $0x10] sm:$0xf]
      %v196 = vld [vmem:[%s177 + $0x14] sm:$0x1]
      %v197 = vld [vmem:[%s177 + $0x18] sm:$0xf]
      %v198 = vld [vmem:[%s177 + $0x1c] sm:$0xf]
      %v199 = vld [vmem:[%s177 + $0x20] sm:$0x1]
      %v200 = vld [vmem:[%s177 + $0x24] sm:$0xf]
      %v201 = vld [vmem:[%s177 + $0x28] sm:$0xf]
      %v202 = vld [vmem:[%s177 + $0x2c] sm:$0x1]
      %v203 = vld [vmem:[%s1] sm:$0xf]
      %v204 = vld [vmem:[%s1 + $0x4] sm:$0xf]
      %v205 = vld [vmem:[%s1 + $0x8] sm:$0xf]
      %v206 = vld [vmem:[%s1 + $0xc] sm:$0xf]
      %v207 = vld [vmem:[%s1 + $0x10] sm:$0xf]
      %v208 = vld [vmem:[%s1 + $0x14] sm:$0xf]
      %v209 = vld [vmem:[%s1 + $0x18] sm:$0xf]
      %v210 = vld [vmem:[%s1 + $0x1c] sm:$0xf]
      %v211 = vld [vmem:[%s1 + $0x20] sm:$0xf]
      %vm212 = vsmask.f32 3328
      %vm213 = vsmask.f32 7440
      %vm214 = vmor %vm212, %vm213
      %v216 = vshrl.u32 %v191, 16
      %v218 = vrot.slane %v216, 4
      %v219 = vshll.u32 %v191, 16
      %v221 = vrot.slane %v219, 5
      %v222 = vor.u32 %v218, %v221
      %v223 = vrot.slane %v222, 4
      %v225 = vshll.u32 %v192, 16
      %v227 = vrot.slane %v225, 5
      %v228 = vsel %vm214, %v223, %v227
      %v229 = vshrl.u32 %v192, 16
      %v231 = vrot.slane %v229, 4
      %v232 = vor.u32 %v231, %v227
      %v233 = vrot.slane %v232, 4
      %v235 = vshll.u32 %v193, 16
      %v237 = vrot.slane %v235, 5
      %v238 = vsel %vm214, %v233, %v237
      %v240 = vshrl.u32 %v194, 16
      %v242 = vrot.slane %v240, 4
      %v243 = vshll.u32 %v194, 16
      %v245 = vrot.slane %v243, 5
      %v246 = vor.u32 %v242, %v245
      %v247 = vrot.slane %v246, 4
      %v249 = vshll.u32 %v195, 16
      %v251 = vrot.slane %v249, 5
      %v252 = vsel %vm214, %v247, %v251
      %v253 = vshrl.u32 %v195, 16
      %v255 = vrot.slane %v253, 4
      %v256 = vor.u32 %v255, %v251
      %v257 = vrot.slane %v256, 4
      %v259 = vshll.u32 %v196, 16
      %v261 = vrot.slane %v259, 5
      %v262 = vsel %vm214, %v257, %v261
      %v264 = vshrl.u32 %v197, 16
      %v266 = vrot.slane %v264, 4
      %v267 = vshll.u32 %v197, 16
      %v269 = vrot.slane %v267, 5
      %v270 = vor.u32 %v266, %v269
      %v271 = vrot.slane %v270, 4
      %v273 = vshll.u32 %v198, 16
      %v275 = vrot.slane %v273, 5
      %v276 = vsel %vm214, %v271, %v275
      %v277 = vshrl.u32 %v198, 16
      %v279 = vrot.slane %v277, 4
      %v280 = vor.u32 %v279, %v275
      %v281 = vrot.slane %v280, 4
      %v283 = vshll.u32 %v199, 16
      %v285 = vrot.slane %v283, 5
      %v286 = vsel %vm214, %v281, %v285
      %v288 = vshrl.u32 %v200, 16
      %v290 = vrot.slane %v288, 4
      %v291 = vshll.u32 %v200, 16
      %v293 = vrot.slane %v291, 5
      %v294 = vor.u32 %v290, %v293
      %v295 = vrot.slane %v294, 4
      %v297 = vshll.u32 %v201, 16
      %v299 = vrot.slane %v297, 5
      %v300 = vsel %vm214, %v295, %v299
      %v301 = vshrl.u32 %v201, 16
      %v303 = vrot.slane %v301, 4
      %v304 = vor.u32 %v303, %v299
      %v305 = vrot.slane %v304, 4
      %v307 = vshll.u32 %v202, 16
      %v309 = vrot.slane %v307, 5
      %v310 = vsel %vm214, %v305, %v309
      %s311 = scalar_lea.vmem %s1, 36
      %v312 = vld [vmem:[%s311] sm:$0xf]
      %v313 = vld [vmem:[%s311 + $0x4] sm:$0xf]
      %v314 = vld [vmem:[%s311 + $0x8] sm:$0xf]
      %v315 = vld [vmem:[%s311 + $0xc] sm:$0xf]
      %v316 = vld [vmem:[%s311 + $0x10] sm:$0xf]
      %v317 = vld [vmem:[%s311 + $0x14] sm:$0xf]
      %v318 = vld [vmem:[%s311 + $0x18] sm:$0xf]
      %v319 = vld [vmem:[%s311 + $0x1c] sm:$0xf]
      %v320 = vld [vmem:[%s311 + $0x20] sm:$0xf]
      %v321 = vunpack.c.l.b16 %v228
      %v322 = vunpack.c.l.b16 %v238
      %v323 = vunpack.c.l.b16 %v252
      %v324 = vunpack.c.l.b16 %v262
      %v325 = vunpack.c.l.b16 %v276
      %v326 = vunpack.c.l.b16 %v286
      %v327 = vunpack.c.l.b16 %v300
      %v328 = vunpack.c.l.b16 %v310
      %v329 = vpack.c.b16 %v322, %v321
      %v330 = vpack.c.b16 %v324, %v323
      %v331 = vpack.c.b16 %v326, %v325
      %v332 = vpack.c.b16 %v328, %v327
      %v342 = vunpack.c.l.b16 %v312
      %v343 = vunpack.c.l.b16 %v313
      %v344 = vunpack.c.l.b16 %v314
      %v345 = vunpack.c.l.b16 %v315
      %v346 = vunpack.c.l.b16 %v316
      %v347 = vunpack.c.l.b16 %v317
      %v348 = vunpack.c.l.b16 %v318
      %v349 = vunpack.c.l.b16 %v319
      %v350 = vunpack.c.l.b16 %v320
      %v351 = vpack.c.b16 %v343, %v342
      %v352 = vpack.c.b16 %v345, %v344
      %v353 = vpack.c.b16 %v347, %v346
      %v354 = vpack.c.b16 %v349, %v348
      %v355 = vpack.c.b16 %v350, %v350
      %vm360 = vcmask 588800
      %v362 = vsel %vm360, %v329, 0
      %v365 = vsel %vm360, %v330, 0
      %v368 = vsel %vm360, %v331, 0
      %v371 = vsel %vm360, %v332, 0
      %vm373 = vcmask 1043456
      %v375 = vsel %vm373, %v355, 0
      %377 = vmatpush.bf16.msra.mxu0 0
      %378 = vmatpush.bf16.msra.mxu0 0
      %379 = vmatpush.bf16.msra.mxu0 0
      %380 = vmatpush.bf16.msra.mxu0 %v375
      %381 = vmatpush.bf16.msra.mxu0 %v354
      %382 = vmatpush.bf16.msra.mxu0 %v353
      %383 = vmatpush.bf16.msra.mxu0 %v352
      %384 = vmatpush.bf16.msra.mxu0 %v351
      %385 = vmatmul.bf16.gmra.mxu0 %v362
      %v386 = vpop.f32.mrf.mxu0
      %v387 = vadd.f32 0.0, %v386
      %v388 = vpop.f32.mrf.mxu0
      %v389 = vadd.f32 0.0, %v388
      %390 = vmatmul.bf16.gmra.mxu0 %v365
      %v391 = vpop.f32.mrf.mxu0
      %v392 = vadd.f32 0.0, %v391
      %v393 = vpop.f32.mrf.mxu0
      %v394 = vadd.f32 0.0, %v393
      %395 = vmatmul.bf16.gmra.mxu0 %v368
      %v396 = vpop.f32.mrf.mxu0
      %v397 = vadd.f32 0.0, %v396
      %v398 = vpop.f32.mrf.mxu0
      %v399 = vadd.f32 0.0, %v398
      %400 = vmatmul.bf16.gmra.mxu0 %v371
      %v401 = vpop.f32.mrf.mxu0
      %v402 = vadd.f32 0.0, %v401
      %v403 = vpop.f32.mrf.mxu0
      %v404 = vadd.f32 0.0, %v403
      %405 = vdwg.mxu0
      %v414 = vunpack.c.l.b16 %v191
      %v415 = vunpack.c.l.b16 %v192
      %v416 = vunpack.c.l.b16 %v194
      %v417 = vunpack.c.l.b16 %v195
      %v418 = vunpack.c.l.b16 %v197
      %v419 = vunpack.c.l.b16 %v198
      %v420 = vunpack.c.l.b16 %v200
      %v421 = vunpack.c.l.b16 %v201
      %v422 = vpack.c.b16 %v415, %v414
      %v423 = vpack.c.b16 %v417, %v416
      %v424 = vpack.c.b16 %v419, %v418
      %v425 = vpack.c.b16 %v421, %v420
      %v435 = vunpack.c.l.b16 %v203
      %v436 = vunpack.c.l.b16 %v204
      %v437 = vunpack.c.l.b16 %v205
      %v438 = vunpack.c.l.b16 %v206
      %v439 = vunpack.c.l.b16 %v207
      %v440 = vunpack.c.l.b16 %v208
      %v441 = vunpack.c.l.b16 %v209
      %v442 = vunpack.c.l.b16 %v210
      %v443 = vunpack.c.l.b16 %v211
      %v444 = vpack.c.b16 %v436, %v435
      %v445 = vpack.c.b16 %v438, %v437
      %v446 = vpack.c.b16 %v440, %v439
      %v447 = vpack.c.b16 %v442, %v441
      %v448 = vpack.c.b16 %v443, %v443
      %v454 = vsel %vm360, %v422, 0
      %v457 = vsel %vm360, %v423, 0
      %v460 = vsel %vm360, %v424, 0
      %v463 = vsel %vm360, %v425, 0
      %v466 = vsel %vm373, %v448, 0
      %468 = vmatpush.bf16.msra.mxu0 0
      %469 = vmatpush.bf16.msra.mxu0 0
      %470 = vmatpush.bf16.msra.mxu0 0
      %471 = vmatpush.bf16.msra.mxu0 %v466
      %472 = vmatpush.bf16.msra.mxu0 %v447
      %473 = vmatpush.bf16.msra.mxu0 %v446
      %474 = vmatpush.bf16.msra.mxu0 %v445
      %475 = vmatpush.bf16.msra.mxu0 %v444
      %476 = vmatmul.bf16.gmra.mxu0 %v454
      %v477 = vpop.f32.mrf.mxu0
      %v478 = vadd.f32 %v387, %v477
      %v479 = vpop.f32.mrf.mxu0
      %v480 = vadd.f32 %v389, %v479
      %481 = vmatmul.bf16.gmra.mxu0 %v457
      %v482 = vpop.f32.mrf.mxu0
      %v483 = vadd.f32 %v392, %v482
      %v484 = vpop.f32.mrf.mxu0
      %v485 = vadd.f32 %v394, %v484
      %486 = vmatmul.bf16.gmra.mxu0 %v460
      %v487 = vpop.f32.mrf.mxu0
      %v488 = vadd.f32 %v397, %v487
      %v489 = vpop.f32.mrf.mxu0
      %v490 = vadd.f32 %v399, %v489
      %491 = vmatmul.bf16.gmra.mxu0 %v463
      %v492 = vpop.f32.mrf.mxu0
      %v493 = vadd.f32 %v402, %v492
      %v494 = vpop.f32.mrf.mxu0
      %v495 = vadd.f32 %v404, %v494
      %496 = vdwg.mxu0
      %vm501 = vcmask 1042432
      %vm502 = vcmask 1046532
      %vm503 = vmor %vm501, %vm502
      %v504 = vrot.slane %v191, 5
      %v505 = vrot.slane %v504, 4
      %v506 = vrot.slane %v192, 5
      %v507 = vsel %vm503, %v505, %v506
      %v508 = vrot.slane %v506, 4
      %v509 = vrot.slane %v193, 5
      %v510 = vsel %vm503, %v508, %v509
      %v511 = vrot.slane %v194, 5
      %v512 = vrot.slane %v511, 4
      %v513 = vrot.slane %v195, 5
      %v514 = vsel %vm503, %v512, %v513
      %v515 = vrot.slane %v513, 4
      %v516 = vrot.slane %v196, 5
      %v517 = vsel %vm503, %v515, %v516
      %v518 = vrot.slane %v197, 5
      %v519 = vrot.slane %v518, 4
      %v520 = vrot.slane %v198, 5
      %v521 = vsel %vm503, %v519, %v520
      %v522 = vrot.slane %v520, 4
      %v523 = vrot.slane %v199, 5
      %v524 = vsel %vm503, %v522, %v523
      %v525 = vrot.slane %v200, 5
      %v526 = vrot.slane %v525, 4
      %v527 = vrot.slane %v201, 5
      %v528 = vsel %vm503, %v526, %v527
      %v529 = vrot.slane %v527, 4
      %v530 = vrot.slane %v202, 5
      %v531 = vsel %vm503, %v529, %v530
      %s532 = scalar_lea.vmem %s1, 72
      %v533 = vld [vmem:[%s532] sm:$0xf]
      %v534 = vld [vmem:[%s532 + $0x4] sm:$0xf]
      %v535 = vld [vmem:[%s532 + $0x8] sm:$0xf]
      %v536 = vld [vmem:[%s532 + $0xc] sm:$0xf]
      %v537 = vld [vmem:[%s532 + $0x10] sm:$0xf]
      %v538 = vld [vmem:[%s532 + $0x14] sm:$0xf]
      %v539 = vld [vmem:[%s532 + $0x18] sm:$0xf]
      %v540 = vld [vmem:[%s532 + $0x1c] sm:$0xf]
      %v541 = vld [vmem:[%s532 + $0x20] sm:$0xf]
      %v542 = vunpack.c.l.b16 %v507
      %v543 = vunpack.c.l.b16 %v510
      %v544 = vunpack.c.l.b16 %v514
      %v545 = vunpack.c.l.b16 %v517
      %v546 = vunpack.c.l.b16 %v521
      %v547 = vunpack.c.l.b16 %v524
      %v548 = vunpack.c.l.b16 %v528
      %v549 = vunpack.c.l.b16 %v531
      %v550 = vpack.c.b16 %v543, %v542
      %v551 = vpack.c.b16 %v545, %v544
      %v552 = vpack.c.b16 %v547, %v546
      %v553 = vpack.c.b16 %v549, %v548
      %v563 = vunpack.c.l.b16 %v533
      %v564 = vunpack.c.l.b16 %v534
      %v565 = vunpack.c.l.b16 %v535
      %v566 = vunpack.c.l.b16 %v536
      %v567 = vunpack.c.l.b16 %v537
      %v568 = vunpack.c.l.b16 %v538
      %v569 = vunpack.c.l.b16 %v539
      %v570 = vunpack.c.l.b16 %v540
      %v571 = vunpack.c.l.b16 %v541
      %v572 = vpack.c.b16 %v564, %v563
      %v573 = vpack.c.b16 %v566, %v565
      %v574 = vpack.c.b16 %v568, %v567
      %v575 = vpack.c.b16 %v570, %v569
      %v576 = vpack.c.b16 %v571, %v571
      %v582 = vsel %vm360, %v550, 0
      %v585 = vsel %vm360, %v551, 0
      %v588 = vsel %vm360, %v552, 0
      %v591 = vsel %vm360, %v553, 0
      %v594 = vsel %vm373, %v576, 0
      %596 = vmatpush.bf16.msra.mxu0 0
      %597 = vmatpush.bf16.msra.mxu0 0
      %598 = vmatpush.bf16.msra.mxu0 0
      %599 = vmatpush.bf16.msra.mxu0 %v594
      %600 = vmatpush.bf16.msra.mxu0 %v575
      %601 = vmatpush.bf16.msra.mxu0 %v574
      %602 = vmatpush.bf16.msra.mxu0 %v573
      %603 = vmatpush.bf16.msra.mxu0 %v572
      %604 = vmatmul.bf16.gmra.mxu0 %v582
      %v605 = vpop.f32.mrf.mxu0
      %v606 = vadd.f32 0.0, %v605
      %v607 = vpop.f32.mrf.mxu0
      %v608 = vadd.f32 0.0, %v607
      %609 = vmatmul.bf16.gmra.mxu0 %v585
      %v610 = vpop.f32.mrf.mxu0
      %v611 = vadd.f32 0.0, %v610
      %v612 = vpop.f32.mrf.mxu0
      %v613 = vadd.f32 0.0, %v612
      %614 = vmatmul.bf16.gmra.mxu0 %v588
      %v615 = vpop.f32.mrf.mxu0
      %v616 = vadd.f32 0.0, %v615
      %v617 = vpop.f32.mrf.mxu0
      %v618 = vadd.f32 0.0, %v617
      %619 = vmatmul.bf16.gmra.mxu0 %v591
      %v620 = vpop.f32.mrf.mxu0
      %v621 = vadd.f32 0.0, %v620
      %v622 = vpop.f32.mrf.mxu0
      %v623 = vadd.f32 0.0, %v622
      %624 = vdwg.mxu0
      %v625 = vadd.f32 %v478, %v606
      %v626 = vadd.f32 %v480, %v608
      %v627 = vadd.f32 %v483, %v611
      %v628 = vadd.f32 %v485, %v613
      %v629 = vadd.f32 %v488, %v616
      %v630 = vadd.f32 %v490, %v618
      %v631 = vadd.f32 %v493, %v621
      %v632 = vadd.f32 %v495, %v623
      %633 = vst [vmem:[%s184] sm:$0xff] %v625
      %634 = vst [vmem:[%s184 + $0x8] sm:$0xff] %v626
      %635 = vst [vmem:[%s184 + $0x10] sm:$0xff] %v627
      %636 = vst [vmem:[%s184 + $0x18] sm:$0xff] %v628
      %637 = vst [vmem:[%s184 + $0x20] sm:$0xff] %v629
      %638 = vst [vmem:[%s184 + $0x28] sm:$0xff] %v630
      %639 = vst [vmem:[%s184 + $0x30] sm:$0xff] %v631
      %640 = vst [vmem:[%s184 + $0x38] sm:$0xff] %v632
      %v641 = vadd.f32 %v625, %v626
      %v642 = vadd.f32 %v641, %v627
      %v643 = vadd.f32 %v642, %v628
      %v644 = vadd.f32 %v643, %v629
      %v645 = vadd.f32 %v644, %v630
      %v646 = vadd.f32 %v645, %v631
      %v647 = vadd.f32 %v646, %v632
      %v648 = vrot.slane %v647, 4
      %v649 = vadd.f32 %v647, %v648
      %v650 = vrot.slane %v649, 2
      %v651 = vadd.f32 %v649, %v650
      %v652 = vrot.slane %v651, 1
      %v653 = vadd.f32 %v651, %v652
      %v654 = vmul.f32 %v625, %v625
      %v655 = vmul.f32 %v626, %v626
      %v656 = vmul.f32 %v627, %v627
      %v657 = vmul.f32 %v628, %v628
      %v658 = vmul.f32 %v629, %v629
      %v659 = vmul.f32 %v630, %v630
      %v660 = vmul.f32 %v631, %v631
      %v661 = vmul.f32 %v632, %v632
      %v662 = vadd.f32 %v654, %v655
      %v663 = vadd.f32 %v662, %v656
      %v664 = vadd.f32 %v663, %v657
      %v665 = vadd.f32 %v664, %v658
      %v666 = vadd.f32 %v665, %v659
      %v667 = vadd.f32 %v666, %v660
      %v668 = vadd.f32 %v667, %v661
      %v669 = vrot.slane %v668, 4
      %v670 = vadd.f32 %v668, %v669
      %v671 = vrot.slane %v670, 2
      %v672 = vadd.f32 %v670, %v671
      %v673 = vrot.slane %v672, 1
      %v674 = vadd.f32 %v672, %v673
      %vm675 = vcmask 1040384
      %v676 = vsel %vm675, %v653, %v674
      %677 = vst [vmem:[%s189] sm:$0x3] %v676
      %s678 = smul.u32 4, %s15
      %p679 = scmp.lt.s32.totalorder %s678, 7
      %s680 = scalar_select %p679, %s678, 7
      %s681 = smul.addr %s680, 2
      %s682 = smul.addr %s681, 8
      %s683 = scalar_lea.vmem %s2, %s682
      %p684 = scmp.lt.s32.totalorder %s15, 1
      %s685 = scalar_select %p684, %s15, 1
      %s686 = smul.addr %s685, 2
      %s687 = scalar_lea.vmem %s3, %s686
      // Predicated region
      $region29: #{conv_layer_forward.2} parent=27 // pred_check
        %p688 = pneg %p80
      $region30: #{conv_layer_forward.2} parent=27 // pred_check_branch
        %690 = sbr.rel (%p688) target = $region32
      $region31: #{conv_layer_forward.2} parent=27 // pred_region
        %s691 = smul.u32 4, %s15
      $region32: #{conv_layer_forward.2} parent=27 // pred_fallthru
        _
      // Predicated region
      $region33: #{conv_layer_forward.2} parent=27 // pred_check
        %p692 = pneg %p106
      $region34: #{conv_layer_forward.2} parent=27 // pred_check_branch
        %694 = sbr.rel (%p692) target = $region36
      $region35: #{conv_layer_forward.2} parent=27 // pred_region
        _
      $region36: #{conv_layer_forward.2} parent=27 // pred_fallthru
        _
    $region28: #{conv_layer_forward.2} parent=5 // pred_fallthru
      _
    %p695 = scmp.le.s32.totalorder 2, %s10
    // Predicated region
    $region37: #{conv_layer_forward.2} parent=5 // pred_check
      %p696 = pneg %p695
    $region38: #{conv_layer_forward.2} parent=5 // pred_check_branch
      %698 = sbr.rel (%p696) target = $region40
    $region39: #{conv_layer_forward.2} parent=5 // pred_region
      %s699 = ssub.s32 %s10, 2
      // Predicated region
      $region41: #{conv_layer_forward.2} parent=39 // pred_check
        %p700 = pneg %p86
      $region42: #{conv_layer_forward.2} parent=39 // pred_check_branch
        %702 = sbr.rel (%p700) target = $region44
      $region43: #{conv_layer_forward.2} parent=39 // pred_region
        %s703 = smul.u32 4, %s16
        %p704 = scmp.lt.s32.totalorder %s703, 7
        %s705 = scalar_select %p704, %s703, 7
        %s706 = smul.addr %s705, 2
        %s707 = smul.addr %s706, 8
        %s708 = scalar_lea.vmem %s2, %s707
      $region44: #{conv_layer_forward.2} parent=39 // pred_fallthru
        _
      // Predicated region
      $region45: #{conv_layer_forward.2} parent=39 // pred_check
        %p709 = pneg %p112
      $region46: #{conv_layer_forward.2} parent=39 // pred_check_branch
        %711 = sbr.rel (%p709) target = $region48
      $region47: #{conv_layer_forward.2} parent=39 // pred_region
        %p712 = scmp.lt.s32.totalorder %s16, 1
        %s713 = scalar_select %p712, %s16, 1
        %s714 = smul.addr %s713, 2
        %s715 = scalar_lea.vmem %s3, %s714
      $region48: #{conv_layer_forward.2} parent=39 // pred_fallthru
        _
    $region40: #{conv_layer_forward.2} parent=5 // pred_fallthru
      _
  $region6: #{conv_layer_forward.2} parent=0 // loop_footer
    %s14 = sadd.s32 1, %s10
  $region7: #{conv_layer_forward.2} parent=0 // loop_footer_branch
    %9 = sbr.rel target = $region3
  $region8: #{conv_layer_forward.2} parent=0 // loop_exit
    _

// kernel: tile.13
$region0: #{tile.13}
  #allocation0 [shape = 's32[1]{0}', space=sflag, size = 0x4, scoped, tag = 'scoped memory for tile.13']
  %s0 = inlined_call_operand.vmem [shape: f32[8], index: 0, kind: input, shape index: {}]
  %s1 = inlined_call_operand.vmem [shape: f32[16,8], index: 1, kind: output, shape index: {}]
  // Predicated region
  $region2: #{tile.13} parent=0 // pred_check
    _
  $region3: #{tile.13} parent=0 // pred_check_branch
    %3 = sbr.rel (0) target = $region5
  $region4: #{tile.13} parent=0 // pred_region
    _
  $region5: #{tile.13} parent=0 // pred_fallthru
    _
  %v4 = vld [vmem:[%s0] ss:$0 sm:$0xff]
  %5 = vst [vmem:[%s1] sm:$0xff] %v4
  %s6 = scalar_lea.vmem %s1, 8
  %7 = vst [vmem:[%s6] sm:$0xff] %v4

// kernel: tile.14
$region0: #{tile.14}
  %s0 = inlined_call_operand.vmem [shape: f32[16,8], index: 0, kind: input, shape index: {}]
  %s1 = inlined_call_operand.vmem [shape: f32[1,128], index: 1, kind: output, shape index: {}]
  $region1: #{tile.14} parent=0
    #allocation0 [shape = 'u8[4096]{0}', space=vmem, size = 0x1000, scoped, tag = 'scoped mem for output reshape']
    %v2 = vld [vmem:[%s0] sm:$0x1]
    %vm3 = vcmask 64512
    %4 = vst.msk [vmem:[#allocation0] sm:$0x1] %vm3, %v2
    %s5 = scalar_lea.vmem %s0, 15
    %v6 = vld [vmem:[%s5] sm:$0x1]
    %7 = vrot.lane.b32.xlu0 %v6, 120
    %v8 = vpop.permute.xlu0 %7
    %vm9 = vcmask 1048512
    %10 = vst.msk [vmem:[#allocation0] sm:$0x1] %vm9, %v8
    %s11 = scalar_lea.vmem %s0, 14
    %v12 = vld [vmem:[%s11] sm:$0x1]
    %13 = vrot.lane.b32.xlu0 %v12, 112
    %v14 = vpop.permute.xlu0 %13
    %vm15 = vcmask 982912
    %16 = vst.msk [vmem:[#allocation0] sm:$0x1] %vm15, %v14
    %s17 = scalar_lea.vmem %s0, 13
    %v18 = vld [vmem:[%s17] sm:$0x1]
    %19 = vrot.lane.b32.xlu0 %v18, 104
    %v20 = vpop.permute.xlu0 %19
    %vm21 = vcmask 917312
    %22 = vst.msk [vmem:[#allocation0] sm:$0x1] %vm21, %v20
    %s23 = scalar_lea.vmem %s0, 12
    %v24 = vld [vmem:[%s23] sm:$0x1]
    %25 = vrot.lane.b32.xlu0 %v24, 96
    %v26 = vpop.permute.xlu0 %25
    %vm27 = vcmask 851712
    %28 = vst.msk [vmem:[#allocation0] sm:$0x1] %vm27, %v26
    %s29 = scalar_lea.vmem %s0, 11
    %v30 = vld [vmem:[%s29] sm:$0x1]
    %31 = vrot.lane.b32.xlu0 %v30, 88
    %v32 = vpop.permute.xlu0 %31
    %vm33 = vcmask 786112
    %34 = vst.msk [vmem:[#allocation0] sm:$0x1] %vm33, %v32
    %s35 = scalar_lea.vmem %s0, 10
    %v36 = vld [vmem:[%s35] sm:$0x1]
    %37 = vrot.lane.b32.xlu0 %v36, 80
    %v38 = vpop.permute.xlu0 %37
    %vm39 = vcmask 720512
    %40 = vst.msk [vmem:[#allocation0] sm:$0x1] %vm39, %v38
    %s41 = scalar_lea.vmem %s0, 9
    %v42 = vld [vmem:[%s41] sm:$0x1]
    %43 = vrot.lane.b32.xlu0 %v42, 72
    %v44 = vpop.permute.xlu0 %43
    %vm45 = vcmask 654912
    %46 = vst.msk [vmem:[#allocation0] sm:$0x1] %vm45, %v44
    %s47 = scalar_lea.vmem %s0, 8
    %v48 = vld [vmem:[%s47] sm:$0x1]
    %49 = vrot.lane.b32.xlu0 %v48, 64
    %v50 = vpop.permute.xlu0 %49
    %vm51 = vcmask 589312
    %52 = vst.msk [vmem:[#allocation0] sm:$0x1] %vm51, %v50
    %s53 = scalar_lea.vmem %s0, 7
    %v54 = vld [vmem:[%s53] sm:$0x1]
    %55 = vrot.lane.b32.xlu0 %v54, 56
    %v56 = vpop.permute.xlu0 %55
    %vm57 = vcmask 523712
    %58 = vst.msk [vmem:[#allocation0] sm:$0x1] %vm57, %v56
    %s59 = scalar_lea.vmem %s0, 6
    %v60 = vld [vmem:[%s59] sm:$0x1]
    %61 = vrot.lane.b32.xlu0 %v60, 48
    %v62 = vpop.permute.xlu0 %61
    %vm63 = vcmask 458112
    %64 = vst.msk [vmem:[#allocation0] sm:$0x1] %vm63, %v62
    %s65 = scalar_lea.vmem %s0, 5
    %v66 = vld [vmem:[%s65] sm:$0x1]
    %67 = vrot.lane.b32.xlu0 %v66, 40
    %v68 = vpop.permute.xlu0 %67
    %vm69 = vcmask 392512
    %70 = vst.msk [vmem:[#allocation0] sm:$0x1] %vm69, %v68
    %s71 = scalar_lea.vmem %s0, 4
    %v72 = vld [vmem:[%s71] sm:$0x1]
    %73 = vrot.lane.b32.xlu0 %v72, 32
    %v74 = vpop.permute.xlu0 %73
    %vm75 = vcmask 326912
    %76 = vst.msk [vmem:[#allocation0] sm:$0x1] %vm75, %v74
    %s77 = scalar_lea.vmem %s0, 3
    %v78 = vld [vmem:[%s77] sm:$0x1]
    %79 = vrot.lane.b32.xlu0 %v78, 24
    %v80 = vpop.permute.xlu0 %79
    %vm81 = vcmask 261312
    %82 = vst.msk [vmem:[#allocation0] sm:$0x1] %vm81, %v80
    %s83 = scalar_lea.vmem %s0, 2
    %v84 = vld [vmem:[%s83] sm:$0x1]
    %85 = vrot.lane.b32.xlu0 %v84, 16
    %v86 = vpop.permute.xlu0 %85
    %vm87 = vcmask 195712
    %88 = vst.msk [vmem:[#allocation0] sm:$0x1] %vm87, %v86
    %s89 = scalar_lea.vmem %s0, 1
    %v90 = vld [vmem:[%s89] sm:$0x1]
    %91 = vrot.lane.b32.xlu0 %v90, 8
    %v92 = vpop.permute.xlu0 %91
    %vm93 = vcmask 130112
    %94 = vst.msk [vmem:[#allocation0] sm:$0x1] %vm93, %v92
    %s96 = ssub.s32 2, 1
    %v97 = vld [vmem:[#allocation0] sm:%s96]
    %s99 = ssub.s32 2, 1
    %100 = vst [vmem:[%s1] sm:%s99] %v97

// kernel: conv_layer_forward.3
$region0: #{conv_layer_forward.3}
  #allocation0 [shape = 'u32[]', space=smem, size = 0x4, offset = 0x4, fixed_abs, tag = 'smem constant byte address 0x4 - core index']
  #allocation1 [shape = 'u32[72,128]{1,0:T(1,128)}', space=vmem, size = 0x9000, scoped, tag = 'internal scratch']
  %s0 = inlined_call_operand.vmem [shape: f32[128,128], index: 0, kind: input, shape index: {}, may-alias: {0,3}]
  %s1 = inlined_call_operand.vmem [shape: f32[1,128], index: 1, kind: input, shape index: {}]
  %s2 = inlined_call_operand.vmem [shape: f32[1,128], index: 2, kind: input, shape index: {}]
  %s3 = inlined_call_operand.vmem [shape: f32[128,128], index: 3, kind: output, shape index: {}, may-alias: {0,3}]
  %s4 = sld [smem:[#allocation0]]
  $region45: #{conv_layer_forward.3} parent=0
    _
  %s6 = ssub.s32 1, %s4
  %s7 = scalar_select 0, %s6, %s4
  loop: start=0, step=1, limit=4
  $region2: #{conv_layer_forward.3} parent=0 // loop_pre_header
    _
  $region3: #{conv_layer_forward.3} parent=0 // loop_header
    %s9 = sphi 0, %s13
    %p10 = scmp.ge.s32.totalorder %s9, 4
    %s19 = sphi 0, %s21
    %s22 = sphi 0, %s19
    %s23 = sphi 0, %s22
    %s39 = sphi 0, %s23
    %s43 = sphi 0, %s43
    %s45 = sphi 0, %s43
    %s46 = sphi 0, %s45
    %s60 = sphi 0, %s46
    %s64 = sphi 0, %s64
    %s66 = sphi 0, %s64
    %s67 = sphi 0, %s66
    %s81 = sphi 0, %s67
    %s87 = sphi 0, %s89
    %s90 = sphi 0, %s87
    %s91 = sphi 0, %s90
    %s107 = sphi 0, %s91
  $region4: #{conv_layer_forward.3} parent=0 // loop_header_branch
    %12 = sbr.rel (%p10) target = $region8
  $region5: #{conv_layer_forward.3} parent=0 // loop_body
    %s14 = ssub.s32 %s9, 1
    %s15 = ssub.s32 %s9, 2
    %s16 = sadd.s32 %s9, 1
    %s17 = ssub.s32 %s9, %s16
    %p18 = scmp.eq.s32.totalorder %s17, 0
    %s20 = sadd.s32 %s19, 1
    %s21 = scalar_select %p18, %s19, %s20
    %p24 = pneg %p18
    %p25 = scmp.eq.s32.totalorder %s9, 1
    %p26 = por %p24, %p25
    %p27 = scmp.ne.s32.totalorder %s19, %s22
    %p28 = scmp.eq.s32.totalorder %s9, 0
    %p29 = por %p27, %p28
    %p30 = scmp.ne.s32.totalorder %s19, %s22
    %p31 = scmp.eq.s32.totalorder %s14, 1
    %p32 = por %p30, %p31
    %p33 = scmp.ne.s32.totalorder %s22, %s23
    %p34 = scmp.eq.s32.totalorder %s14, 0
    %p35 = por %p33, %p34
    %p36 = scmp.ne.s32.totalorder %s22, %s23
    %p37 = scmp.eq.s32.totalorder %s15, 1
    %p38 = por %p36, %p37
    %p40 = scmp.ne.s32.totalorder %s23, %s39
    %p41 = scmp.eq.s32.totalorder %s15, 0
    %p42 = por %p40, %p41
    %s44 = sadd.s32 %s43, 1
    %p47 = scmp.eq.s32.totalorder %s9, 1
    %p48 = scmp.ne.s32.totalorder %s43, %s45
    %p49 = scmp.eq.s32.totalorder %s9, 0
    %p50 = por %p48, %p49
    %p51 = scmp.ne.s32.totalorder %s43, %s45
    %p52 = scmp.eq.s32.totalorder %s14, 1
    %p53 = por %p51, %p52
    %p54 = scmp.ne.s32.totalorder %s45, %s46
    %p55 = scmp.eq.s32.totalorder %s14, 0
    %p56 = por %p54, %p55
    %p57 = scmp.ne.s32.totalorder %s45, %s46
    %p58 = scmp.eq.s32.totalorder %s15, 1
    %p59 = por %p57, %p58
    %p61 = scmp.ne.s32.totalorder %s46, %s60
    %p62 = scmp.eq.s32.totalorder %s15, 0
    %p63 = por %p61, %p62
    %s65 = sadd.s32 %s64, 1
    %p68 = scmp.eq.s32.totalorder %s9, 1
    %p69 = scmp.ne.s32.totalorder %s64, %s66
    %p70 = scmp.eq.s32.totalorder %s9, 0
    %p71 = por %p69, %p70
    %p72 = scmp.ne.s32.totalorder %s64, %s66
    %p73 = scmp.eq.s32.totalorder %s14, 1
    %p74 = por %p72, %p73
    %p75 = scmp.ne.s32.totalorder %s66, %s67
    %p76 = scmp.eq.s32.totalorder %s14, 0
    %p77 = por %p75, %p76
    %p78 = scmp.ne.s32.totalorder %s66, %s67
    %p79 = scmp.eq.s32.totalorder %s15, 1
    %p80 = por %p78, %p79
    %p82 = scmp.ne.s32.totalorder %s67, %s81
    %p83 = scmp.eq.s32.totalorder %s15, 0
    %p84 = por %p82, %p83
    %s85 = ssub.s32 %s9, %s16
    %p86 = scmp.eq.s32.totalorder %s85, 0
    %s88 = sadd.s32 %s87, 1
    %s89 = scalar_select %p86, %s87, %s88
    %p92 = pneg %p86
    %p93 = scmp.eq.s32.totalorder %s9, 1
    %p94 = por %p92, %p93
    %p95 = scmp.ne.s32.totalorder %s87, %s90
    %p96 = scmp.eq.s32.totalorder %s9, 0
    %p97 = por %p95, %p96
    %p98 = scmp.ne.s32.totalorder %s87, %s90
    %p99 = scmp.eq.s32.totalorder %s14, 1
    %p100 = por %p98, %p99
    %p101 = scmp.ne.s32.totalorder %s90, %s91
    %p102 = scmp.eq.s32.totalorder %s14, 0
    %p103 = por %p101, %p102
    %p104 = scmp.ne.s32.totalorder %s90, %s91
    %p105 = scmp.eq.s32.totalorder %s15, 1
    %p106 = por %p104, %p105
    %p108 = scmp.ne.s32.totalorder %s91, %s107
    %p109 = scmp.eq.s32.totalorder %s15, 0
    %p110 = por %p108, %p109
    %p111 = scmp.le.s32.totalorder 1, %s9
    %p112 = scmp.lt.s32.totalorder %s9, 3
    %p113 = pnand %p111, %p112
    %p114 = pneg %p113
    // Predicated region
    $region9: #{conv_layer_forward.3} parent=5 // pred_check
      _
    $region10: #{conv_layer_forward.3} parent=5 // pred_check_branch
      %116 = sbr.rel (%p113) target = $region12
    $region11: #{conv_layer_forward.3} parent=5 // pred_region
      %s117 = ssub.s32 %s9, 1
      // Predicated region
      $region13: #{conv_layer_forward.3} parent=11 // pred_check
        %p118 = pneg %p56
      $region14: #{conv_layer_forward.3} parent=11 // pred_check_branch
        %120 = sbr.rel (%p118) target = $region16
      $region15: #{conv_layer_forward.3} parent=11 // pred_region
        _
      $region16: #{conv_layer_forward.3} parent=11 // pred_fallthru
        _
      // Predicated region
      $region17: #{conv_layer_forward.3} parent=11 // pred_check
        %p121 = pneg %p77
      $region18: #{conv_layer_forward.3} parent=11 // pred_check_branch
        %123 = sbr.rel (%p121) target = $region20
      $region19: #{conv_layer_forward.3} parent=11 // pred_region
        _
      $region20: #{conv_layer_forward.3} parent=11 // pred_fallthru
        _
    $region12: #{conv_layer_forward.3} parent=5 // pred_fallthru
      _
    %p124 = scmp.lt.s32.totalorder %s9, 2
    // Predicated region
    $region21: #{conv_layer_forward.3} parent=5 // pred_check
      %p125 = pneg %p124
    $region22: #{conv_layer_forward.3} parent=5 // pred_check_branch
      %127 = sbr.rel (%p125) target = $region24
    $region23: #{conv_layer_forward.3} parent=5 // pred_region
      // Predicated region
      $region25: #{conv_layer_forward.3} parent=23 // pred_check
        %p128 = pneg %p29
      $region26: #{conv_layer_forward.3} parent=23 // pred_check_branch
        %130 = sbr.rel (%p128) target = $region28
      $region27: #{conv_layer_forward.3} parent=23 // pred_region
        %s131 = smul.u32 8, %s9
        %p132 = scmp.lt.s32.totalorder %s131, 15
        %s133 = scalar_select %p132, %s131, 15
        %s134 = smul.addr %s133, 8
        %s135 = scalar_lea.vmem %s0, %s134
        %s136 = smul.u32 8, %s9
      $region28: #{conv_layer_forward.3} parent=23 // pred_fallthru
        _
    $region24: #{conv_layer_forward.3} parent=5 // pred_fallthru
      _
    %p137 = scmp.le.s32.totalorder 1, %s9
    %p138 = scmp.lt.s32.totalorder %s9, 3
    %p139 = pnand %p137, %p138
    %p140 = pneg %p139
    // Predicated region
    $region29: #{conv_layer_forward.3} parent=5 // pred_check
      _
    $region30: #{conv_layer_forward.3} parent=5 // pred_check_branch
      %142 = sbr.rel (%p139) target = $region32
    $region31: #{conv_layer_forward.3} parent=5 // pred_region
      %s143 = ssub.s32 %s9, 1
      %s144 = smul.u32 8, %s14
      %p145 = scmp.lt.s32.totalorder %s144, 15
      %s146 = scalar_select %p145, %s144, 15
      %s147 = smul.addr %s146, 8
      %s148 = scalar_lea.vmem %s0, %s147
      %p149 = pneg %p35
      %p150 = pneg %p32
      %p151 = pneg %p56
      %p152 = pneg %p53
      %p153 = pneg %p77
      %p154 = pneg %p74
      %p155 = pneg %p103
      %p156 = pneg %p100
      %s157 = smul.u32 8, %s14
      %p158 = scmp.lt.s32.totalorder %s157, 15
      %s159 = scalar_select %p158, %s157, 15
      %s160 = smul.addr %s159, 8
      %s161 = scalar_lea.vmem %s3, %s160
      %s162 = smul.u32 8, %s14
      %p163 = scmp.lt.s32.totalorder %s162, 15
      %s164 = scalar_select %p163, %s162, 15
      %s165 = smul.addr %s164, 8
      %s166 = scalar_lea.vmem %s0, %s165
      %s167 = smul.u32 8, %s14
      %s168 = smul.u32 8, %s14
      %p169 = scmp.lt.s32.totalorder %s168, 15
      %s170 = scalar_select %p169, %s168, 15
      %s171 = smul.addr %s170, 8
      %s172 = scalar_lea.vmem %s3, %s171
      %s173 = smul.u32 8, %s14
      %v174 = vld [vmem:[%s166] sm:$0xff]
      %v175 = vld [vmem:[%s166 + $0x8] sm:$0xff]
      %v176 = vld [vmem:[%s166 + $0x10] sm:$0xff]
      %v177 = vld [vmem:[%s166 + $0x18] sm:$0xff]
      %v178 = vld [vmem:[%s166 + $0x20] sm:$0xff]
      %v179 = vld [vmem:[%s166 + $0x28] sm:$0xff]
      %v180 = vld [vmem:[%s166 + $0x30] sm:$0xff]
      %v181 = vld [vmem:[%s166 + $0x38] sm:$0xff]
      %v182 = vld [vmem:[%s1] sm:$0x1]
      %v184 = vperm.slane %v182, 0
      %v186 = vmul.f32 %v174, %v184
      %v187 = vmul.f32 %v175, %v184
      %v188 = vmul.f32 %v176, %v184
      %v189 = vmul.f32 %v177, %v184
      %v190 = vmul.f32 %v178, %v184
      %v191 = vmul.f32 %v179, %v184
      %v192 = vmul.f32 %v180, %v184
      %v193 = vmul.f32 %v181, %v184
      %v194 = vld [vmem:[%s2] sm:$0x1]
      %v196 = vperm.slane %v194, 0
      %v198 = vadd.f32 %v186, %v196
      %v199 = vadd.f32 %v187, %v196
      %v200 = vadd.f32 %v188, %v196
      %v201 = vadd.f32 %v189, %v196
      %v202 = vadd.f32 %v190, %v196
      %v203 = vadd.f32 %v191, %v196
      %v204 = vadd.f32 %v192, %v196
      %v205 = vadd.f32 %v193, %v196
      %206 = vst [vmem:[%s172] sm:$0xff] %v198
      %207 = vst [vmem:[%s172 + $0x8] sm:$0xff] %v199
      %208 = vst [vmem:[%s172 + $0x10] sm:$0xff] %v200
      %209 = vst [vmem:[%s172 + $0x18] sm:$0xff] %v201
      %210 = vst [vmem:[%s172 + $0x20] sm:$0xff] %v202
      %211 = vst [vmem:[%s172 + $0x28] sm:$0xff] %v203
      %212 = vst [vmem:[%s172 + $0x30] sm:$0xff] %v204
      %213 = vst [vmem:[%s172 + $0x38] sm:$0xff] %v205
      %s214 = smul.u32 8, %s14
      %p215 = scmp.lt.s32.totalorder %s214, 15
      %s216 = scalar_select %p215, %s214, 15
      %s217 = smul.addr %s216, 8
      %s218 = scalar_lea.vmem %s3, %s217
      // Predicated region
      $region33: #{conv_layer_forward.3} parent=31 // pred_check
        %p219 = pneg %p100
      $region34: #{conv_layer_forward.3} parent=31 // pred_check_branch
        %221 = sbr.rel (%p219) target = $region36
      $region35: #{conv_layer_forward.3} parent=31 // pred_region
        %s222 = smul.u32 8, %s14
      $region36: #{conv_layer_forward.3} parent=31 // pred_fallthru
        _
    $region32: #{conv_layer_forward.3} parent=5 // pred_fallthru
      _
    %p223 = scmp.le.s32.totalorder 2, %s9
    // Predicated region
    $region37: #{conv_layer_forward.3} parent=5 // pred_check
      %p224 = pneg %p223
    $region38: #{conv_layer_forward.3} parent=5 // pred_check_branch
      %226 = sbr.rel (%p224) target = $region40
    $region39: #{conv_layer_forward.3} parent=5 // pred_region
      %s227 = ssub.s32 %s9, 2
      // Predicated region
      $region41: #{conv_layer_forward.3} parent=39 // pred_check
        %p228 = pneg %p106
      $region42: #{conv_layer_forward.3} parent=39 // pred_check_branch
        %230 = sbr.rel (%p228) target = $region44
      $region43: #{conv_layer_forward.3} parent=39 // pred_region
        %s231 = smul.u32 8, %s15
        %p232 = scmp.lt.s32.totalorder %s231, 15
        %s233 = scalar_select %p232, %s231, 15
        %s234 = smul.addr %s233, 8
        %s235 = scalar_lea.vmem %s3, %s234
      $region44: #{conv_layer_forward.3} parent=39 // pred_fallthru
        _
    $region40: #{conv_layer_forward.3} parent=5 // pred_fallthru
      _
  $region6: #{conv_layer_forward.3} parent=0 // loop_footer
    %s13 = sadd.s32 1, %s9
  $region7: #{conv_layer_forward.3} parent=0 // loop_footer_branch
    %8 = sbr.rel target = $region3
  $region8: #{conv_layer_forward.3} parent=0 // loop_exit
    _

</llo_original>
